<compile_context>
chip_gen: v7x
topology: tpu7x:2x2x1
jax: 0.10.0
libtpu: 0.0.40
codegen_flags: <defaults>
</compile_context>

<pallas_src>
import jax
import jax.numpy as jnp
from jax.experimental import pallas as pl
from jax.experimental.pallas import tpu as pltpu

LANES = 128          # vreg lane width
TILE_ROWS = 512      # (512, 128) f32 tile = 256 KiB
_MIN_PALLAS_ELEMS = 1024   # below this, plain JAX beats kernel-launch overhead


def linear_kernel(w_ref, b_ref, x_ref, o_ref):
    # w_ref, b_ref: (1,) scalars in SMEM (read once, hoisted above the FMA)
    # x_ref, o_ref: (tile_rows, 128) lane-dense tiles in VMEM
    w = w_ref[0]
    b = b_ref[0]
    o_ref[...] = x_ref[...] * w + b


def linear_forward(x, w, b):
    """y = x @ W^T + b for W of shape (1, 1), b of shape (1,).

    x: (..., 1) float array (same contract as torch.nn.Linear(1, 1)).
    returns: same shape as x, float32.
    """
    orig_shape = x.shape
    x = x.astype(jnp.float32)
    w_s = jnp.asarray(w, jnp.float32).reshape(-1)[:1]   # (1,)
    b_s = jnp.asarray(b, jnp.float32).reshape(-1)[:1]   # (1,)

    n = x.size
    # Tiny workloads: custom-call + per-grid-step overhead dominates; skip Pallas.
    if n < _MIN_PALLAS_ELEMS:
        return (x * w_s[0] + b_s[0]).reshape(orig_shape)

    # --- lane-dense repack: pad flat length to a multiple of 8*128 so the
    #     2-D slab has (8,128)-aligned rows, then tile rows by TILE_ROWS. ---
    flat = x.reshape(-1)
    align = 8 * LANES
    n_pad = ((n + align - 1) // align) * align
    if n_pad != n:
        flat = jnp.pad(flat, (0, n_pad - n))
    rows = n_pad // LANES
    x2 = flat.reshape(rows, LANES)

    tile_rows = min(TILE_ROWS, rows)          # rows is a multiple of 8
    grid = (pl.cdiv(rows, tile_rows),)

    y2 = pl.pallas_call(
        linear_kernel,
        out_shape=jax.ShapeDtypeStruct((rows, LANES), jnp.float32),
        grid=grid,
        in_specs=[
            pl.BlockSpec(memory_space=pltpu.SMEM),                 # w scalar
            pl.BlockSpec(memory_space=pltpu.SMEM),                 # b scalar
            pl.BlockSpec((tile_rows, LANES), lambda i: (i, 0)),    # x tile
        ],
        out_specs=pl.BlockSpec((tile_rows, LANES), lambda i: (i, 0)),
        compiler_params=pltpu.CompilerParams(
            dimension_semantics=("parallel",)),
    )(w_s, b_s, x2)

    return y2.reshape(-1)[:n].reshape(orig_shape)


if __name__ == "__main__":
    key = jax.random.PRNGKey(0)
    kx, kw, kb = jax.random.split(key, 3)

    # Parameter init matching torch.nn.Linear(1, 1) shapes:
    #   weight: (out_features=1, in_features=1), bias: (1,)
    w = jax.random.uniform(kw, (1, 1), jnp.float32, minval=-1.0, maxval=1.0)
    b = jax.random.uniform(kb, (1,), jnp.float32, minval=-1.0, maxval=1.0)

    # Pallas path: N not a multiple of 128 (exercises padding) and > one tile
    # (exercises the multi-step pipelined grid + partial last block).
    n = 70_000
    x = jax.random.normal(kx, (n, 1), jnp.float32)
    y = linear_forward(x, w, b)
    jax.block_until_ready(y)

    y_ref = x * w[0, 0] + b[0]               # exact PyTorch Linear(1,1) semantics
    assert y.shape == (n, 1)
    assert jnp.allclose(y, y_ref, atol=1e-6), "mismatch vs reference (pallas path)"

    # Tiny-input fallback path (plain JAX), matching the original small test.
    x_small = jax.random.normal(kx, (8, 1), jnp.float32)
    y_small = linear_forward(x_small, w, b)
    jax.block_until_ready(y_small)
    assert y_small.shape == (8, 1)
    assert jnp.allclose(y_small, x_small * w[0, 0] + b[0], atol=1e-6), \
        "mismatch vs reference (small path)"

    print("KERNEL_OK")
</pallas_src>

<mosaic_0001>
module attributes {stable_mosaic.version = 11 : i64} {
  func.func @linear_kernel(%arg0: i32, %arg1: memref<1xf32, #tpu.memory_space<smem>>, %arg2: memref<1xf32, #tpu.memory_space<smem>>, %arg3: memref<512x128xf32, #tpu.memory_space<vmem>>, %arg4: memref<512x128xf32, #tpu.memory_space<vmem>>) attributes {dimension_semantics = [#tpu.dimension_semantics<parallel>], iteration_bounds = array<i64: 2>, scalar_prefetch = 0 : i64, scratch_operands = 0 : i64, tpu.core_type = #tpu.core_type<tc>, window_params = [{transform_indices = @transform_0, window_bounds = array<i64: 1>}, {transform_indices = @transform_1, window_bounds = array<i64: 1>}, {transform_indices = @transform_2, window_bounds = array<i64: 512, 128>}, {transform_indices = @transform_3, window_bounds = array<i64: 512, 128>}]} {
    %c0 = arith.constant 0 : index
    %0 = memref.load %arg1[%c0] : memref<1xf32, #tpu.memory_space<smem>>
    %c0_0 = arith.constant 0 : index
    %1 = memref.load %arg2[%c0_0] : memref<1xf32, #tpu.memory_space<smem>>
    %c0_1 = arith.constant 0 : index
    %c0_2 = arith.constant 0 : index
    %2 = vector.load %arg3[%c0_1, %c0_2] : memref<512x128xf32, #tpu.memory_space<vmem>>, vector<512x128xf32>
    %3 = vector.broadcast %0 : f32 to vector<512x128xf32>
    %4 = arith.mulf %2, %3 : vector<512x128xf32>
    %5 = vector.broadcast %1 : f32 to vector<512x128xf32>
    %6 = arith.addf %4, %5 : vector<512x128xf32>
    %c0_3 = arith.constant 0 : index
    %c0_4 = arith.constant 0 : index
    %7 = vector.load %arg4[%c0_3, %c0_4] : memref<512x128xf32, #tpu.memory_space<vmem>>, vector<512x128xf32>
    tpu.vector_store %arg4[%c0_3, %c0_4], %6 {strides = array<i32>} : memref<512x128xf32, #tpu.memory_space<vmem>>, vector<512x128xf32>,
    return
  }
  func.func @transform_0(%arg0: i32) -> i32 {
    %c0_i32 = arith.constant 0 : i32
    %c0_i32_0 = arith.constant 0 : i32
    return %c0_i32 : i32
  }
  func.func @transform_1(%arg0: i32) -> i32 {
    %c0_i32 = arith.constant 0 : i32
    %c0_i32_0 = arith.constant 0 : i32
    return %c0_i32 : i32
  }
  func.func @transform_2(%arg0: i32) -> (i32, i32) {
    %c0_i32 = arith.constant 0 : i32
    %c0_i32_0 = arith.constant 0 : i32
    return %arg0, %c0_i32 : i32, i32
  }
  func.func @transform_3(%arg0: i32) -> (i32, i32) {
    %c0_i32 = arith.constant 0 : i32
    %c0_i32_0 = arith.constant 0 : i32
    return %arg0, %c0_i32 : i32, i32
  }
}

</mosaic_0001>

<llo_original>
// kernel: tpu_custom_call.1
$region0: #{tpu_custom_call.1}
  #allocation0 [shape = 'u32[]', space=smem, size = 0x4, offset = 0x4, fixed_abs, tag = 'smem constant byte address 0x4 - core index']
  #allocation1 [shape = 'u32[144,128]{1,0:T(1,128)}', space=vmem, size = 0x12000, scoped, tag = 'internal scratch']
  #allocation2 [shape = 'f32[1]{0:T(128)S(6)}', space=smem, size = 0x200, scoped, tag = 'scoped memory for tpu_custom_call.1']
  #allocation3 [shape = 'f32[1]{0:T(128)S(6)}', space=smem, size = 0x200, scoped, tag = 'scoped memory for tpu_custom_call.1']
  %s0 = inlined_call_operand.<no memory space> [shape: f32[1], index: 0, kind: input, shape index: {}]
  %s1 = inlined_call_operand.<no memory space> [shape: f32[1], index: 1, kind: input, shape index: {}]
  %s2 = inlined_call_operand.hbm [shape: f32[552,128], index: 2, kind: input, shape index: {}]
  %s3 = inlined_call_operand.hbm [shape: f32[552,128], index: 3, kind: output, shape index: {}]
  %s4 = sld [smem:[#allocation0]]
  $region49: #{tpu_custom_call.1} parent=0
    _
  %s6 = ssub.s32 1, %s4
  %s7 = scalar_select 0, %s6, %s4
  %8 = sst [smem:[#allocation2]] %s0
  %9 = sst [smem:[#allocation3]] %s1
  $region1: #{tpu_custom_call.1} parent=0
    #allocation4 [shape = 'u8[524288]{0}', space=vmem, size = 0x80000, scoped, tag = 'input window, operand 2']
    #allocation5 [shape = 's32[2]{0}', space=sflag, size = 0x8, scoped, tag = 'scoped memory for tpu_custom_call.1']
    #allocation6 [shape = 's32[2]{0}', space=sflag, size = 0x8, scoped, tag = 'scoped memory for tpu_custom_call.1']
    #allocation7 [shape = 'u8[524288]{0}', space=vmem, size = 0x80000, scoped, tag = 'output window, operand 0']
    %10 = vsyncpa [#allocation5], 0
    %s11 = scalar_lea.sflag [#allocation5], 1
    %12 = vsyncpa %s11, 0
    %13 = vsyncpa [#allocation6], 0
    %s14 = scalar_lea.sflag [#allocation6], 1
    %15 = vsyncpa %s14, 0
    loop: start=0, step=1, limit=4
    $region2: #{tpu_custom_call.1} parent=1 // loop_pre_header
      _
    $region3: #{tpu_custom_call.1} parent=1 // loop_header
      %s17 = sphi 0, %s21
      %p18 = scmp.ge.s32.totalorder %s17, 4
      %s25 = sphi 0, %s25
      %s27 = sphi 0, %s25
      %s28 = sphi 0, %s27
      %s42 = sphi 0, %s28
      %s46 = sphi 0, %s46
      %s48 = sphi 0, %s46
      %s49 = sphi 0, %s48
      %s63 = sphi 0, %s49
      %s69 = sphi 0, %s71
      %s72 = sphi 0, %s69
      %s73 = sphi 0, %s72
      %s89 = sphi 0, %s73
      %s95 = sphi 0, %s97
      %s98 = sphi 0, %s95
      %s99 = sphi 0, %s98
      %s115 = sphi 0, %s99
    $region4: #{tpu_custom_call.1} parent=1 // loop_header_branch
      %20 = sbr.rel (%p18) target = $region8
    $region5: #{tpu_custom_call.1} parent=1 // loop_body
      %s22 = ssub.s32 %s17, 1
      %s23 = ssub.s32 %s17, 2
      %s24 = sadd.s32 %s17, 1
      %s26 = sadd.s32 %s25, 1
      %p29 = scmp.eq.s32.totalorder %s17, 1
      %p30 = scmp.ne.s32.totalorder %s25, %s27
      %p31 = scmp.eq.s32.totalorder %s17, 0
      %p32 = por %p30, %p31
      %p33 = scmp.ne.s32.totalorder %s25, %s27
      %p34 = scmp.eq.s32.totalorder %s22, 1
      %p35 = por %p33, %p34
      %p36 = scmp.ne.s32.totalorder %s27, %s28
      %p37 = scmp.eq.s32.totalorder %s22, 0
      %p38 = por %p36, %p37
      %p39 = scmp.ne.s32.totalorder %s27, %s28
      %p40 = scmp.eq.s32.totalorder %s23, 1
      %p41 = por %p39, %p40
      %p43 = scmp.ne.s32.totalorder %s28, %s42
      %p44 = scmp.eq.s32.totalorder %s23, 0
      %p45 = por %p43, %p44
      %s47 = sadd.s32 %s46, 1
      %p50 = scmp.eq.s32.totalorder %s17, 1
      %p51 = scmp.ne.s32.totalorder %s46, %s48
      %p52 = scmp.eq.s32.totalorder %s17, 0
      %p53 = por %p51, %p52
      %p54 = scmp.ne.s32.totalorder %s46, %s48
      %p55 = scmp.eq.s32.totalorder %s22, 1
      %p56 = por %p54, %p55
      %p57 = scmp.ne.s32.totalorder %s48, %s49
      %p58 = scmp.eq.s32.totalorder %s22, 0
      %p59 = por %p57, %p58
      %p60 = scmp.ne.s32.totalorder %s48, %s49
      %p61 = scmp.eq.s32.totalorder %s23, 1
      %p62 = por %p60, %p61
      %p64 = scmp.ne.s32.totalorder %s49, %s63
      %p65 = scmp.eq.s32.totalorder %s23, 0
      %p66 = por %p64, %p65
      %s67 = ssub.s32 %s17, %s24
      %p68 = scmp.eq.s32.totalorder %s67, 0
      %s70 = sadd.s32 %s69, 1
      %s71 = scalar_select %p68, %s69, %s70
      %p74 = pneg %p68
      %p75 = scmp.eq.s32.totalorder %s17, 1
      %p76 = por %p74, %p75
      %p77 = scmp.ne.s32.totalorder %s69, %s72
      %p78 = scmp.eq.s32.totalorder %s17, 0
      %p79 = por %p77, %p78
      %p80 = scmp.ne.s32.totalorder %s69, %s72
      %p81 = scmp.eq.s32.totalorder %s22, 1
      %p82 = por %p80, %p81
      %p83 = scmp.ne.s32.totalorder %s72, %s73
      %p84 = scmp.eq.s32.totalorder %s22, 0
      %p85 = por %p83, %p84
      %p86 = scmp.ne.s32.totalorder %s72, %s73
      %p87 = scmp.eq.s32.totalorder %s23, 1
      %p88 = por %p86, %p87
      %p90 = scmp.ne.s32.totalorder %s73, %s89
      %p91 = scmp.eq.s32.totalorder %s23, 0
      %p92 = por %p90, %p91
      %s93 = ssub.s32 %s17, %s24
      %p94 = scmp.eq.s32.totalorder %s93, 0
      %s96 = sadd.s32 %s95, 1
      %s97 = scalar_select %p94, %s95, %s96
      %p100 = pneg %p94
      %p101 = scmp.eq.s32.totalorder %s17, 1
      %p102 = por %p100, %p101
      %p103 = scmp.ne.s32.totalorder %s95, %s98
      %p104 = scmp.eq.s32.totalorder %s17, 0
      %p105 = por %p103, %p104
      %p106 = scmp.ne.s32.totalorder %s95, %s98
      %p107 = scmp.eq.s32.totalorder %s22, 1
      %p108 = por %p106, %p107
      %p109 = scmp.ne.s32.totalorder %s98, %s99
      %p110 = scmp.eq.s32.totalorder %s22, 0
      %p111 = por %p109, %p110
      %p112 = scmp.ne.s32.totalorder %s98, %s99
      %p113 = scmp.eq.s32.totalorder %s23, 1
      %p114 = por %p112, %p113
      %p116 = scmp.ne.s32.totalorder %s99, %s115
      %p117 = scmp.eq.s32.totalorder %s23, 0
      %p118 = por %p116, %p117
      %p119 = scmp.le.s32.totalorder 1, %s17
      %p120 = scmp.lt.s32.totalorder %s17, 3
      %p121 = pnand %p119, %p120
      %p122 = pneg %p121
      // Predicated region
      $region9: #{tpu_custom_call.1} parent=5 // pred_check
        _
      $region10: #{tpu_custom_call.1} parent=5 // pred_check_branch
        %124 = sbr.rel (%p121) target = $region12
      $region11: #{tpu_custom_call.1} parent=5 // pred_region
        %s125 = ssub.s32 %s17, 1
        // Predicated region
        $region13: #{tpu_custom_call.1} parent=11 // pred_check
          %p126 = pneg %p38
        $region14: #{tpu_custom_call.1} parent=11 // pred_check_branch
          %128 = sbr.rel (%p126) target = $region16
        $region15: #{tpu_custom_call.1} parent=11 // pred_region
          _
        $region16: #{tpu_custom_call.1} parent=11 // pred_fallthru
          _
        // Predicated region
        $region17: #{tpu_custom_call.1} parent=11 // pred_check
          %p129 = pneg %p59
        $region18: #{tpu_custom_call.1} parent=11 // pred_check_branch
          %131 = sbr.rel (%p129) target = $region20
        $region19: #{tpu_custom_call.1} parent=11 // pred_region
          _
        $region20: #{tpu_custom_call.1} parent=11 // pred_fallthru
          _
      $region12: #{tpu_custom_call.1} parent=5 // pred_fallthru
        _
      %p132 = scmp.lt.s32.totalorder %s17, 2
      // Predicated region
      $region21: #{tpu_custom_call.1} parent=5 // pred_check
        %p133 = pneg %p132
      $region22: #{tpu_custom_call.1} parent=5 // pred_check_branch
        %135 = sbr.rel (%p133) target = $region24
      $region23: #{tpu_custom_call.1} parent=5 // pred_region
        // Predicated region
        $region25: #{tpu_custom_call.1} parent=23 // pred_check
          %p136 = pneg %p79
        $region26: #{tpu_custom_call.1} parent=23 // pred_check_branch
          %138 = sbr.rel (%p136) target = $region28
        $region27: #{tpu_custom_call.1} parent=23 // pred_region
          %s139 = sand.u32 %s69, 1
          %s140 = scalar_lea.sflag [#allocation5], %s139
          %s141 = sand.u32 %s69, 1
          %s142 = smul.addr %s141, 512
          %s143 = scalar_lea.vmem [#allocation4], %s142
          %s144 = smul.u32 64, %s17
          %s145 = ssub.s32 69, %s144
          %p146 = scmp.lt.s32.totalorder %s145, 64
          %s147 = scalar_select %p146, %s145, 64
          %s148 = smul.u32 128, %s147
          %s150 = ssub.s32 8192, %s148
          %151 = vsyncadd %s140, %s150
          %p152 = scmp.ne.s32.totalorder 0, %s148
          %s153 = smul.addr %s144, 128
          %s154 = scalar_lea.hbm %s2, %s153
          %s155 = smul.u32 8, %s147
          %s156 = sshll.u32 %s143, 4
          %s157 = int_to_ptr.vmem [resolvable:$true] %s156
          %s158 = sshll.u32 %s155, 4
          %162 = dma.hbm_to_vmem [thread:$0]  (%p152), %s154, %s158, %s157, %s140, 128, 128, 8
        $region28: #{tpu_custom_call.1} parent=23 // pred_fallthru
          _
      $region24: #{tpu_custom_call.1} parent=5 // pred_fallthru
        _
      %p163 = scmp.le.s32.totalorder 1, %s17
      %p164 = scmp.lt.s32.totalorder %s17, 3
      %p165 = pnand %p163, %p164
      %p166 = pneg %p165
      // Predicated region
      $region29: #{tpu_custom_call.1} parent=5 // pred_check
        _
      $region30: #{tpu_custom_call.1} parent=5 // pred_check_branch
        %168 = sbr.rel (%p165) target = $region32
      $region31: #{tpu_custom_call.1} parent=5 // pred_region
        %s169 = ssub.s32 %s17, 1
        %s170 = sand.u32 %s72, 1
        %s171 = scalar_lea.sflag [#allocation5], %s170
        %s172 = sand.u32 %s72, 1
        %s173 = smul.addr %s172, 512
        %s174 = scalar_lea.vmem [#allocation4], %s173
        // Predicated region
        $region33: #{tpu_custom_call.1} parent=31 // pred_check
          %p175 = pneg %p85
        $region34: #{tpu_custom_call.1} parent=31 // pred_check_branch
          %177 = sbr.rel (%p175) target = $region36
        $region35: #{tpu_custom_call.1} parent=31 // pred_region
          %178 = dma.done %s171, 8192
        $region36: #{tpu_custom_call.1} parent=31 // pred_fallthru
          _
        %p179 = pneg %p38
        %p180 = pneg %p35
        %p181 = pneg %p59
        %p182 = pneg %p56
        %s183 = sand.u32 %s72, 1
        %s184 = scalar_lea.sflag [#allocation5], %s183
        %s185 = sand.u32 %s72, 1
        %s186 = smul.addr %s185, 512
        %s187 = scalar_lea.vmem [#allocation4], %s186
        %p188 = pneg %p85
        %p189 = pneg %p82
        %p190 = pneg %p111
        %p191 = pneg %p108
        %s192 = sand.u32 %s98, 1
        %s193 = scalar_lea.sflag [#allocation6], %s192
        %s194 = sand.u32 %s98, 1
        %s195 = smul.addr %s194, 512
        %s196 = scalar_lea.vmem [#allocation7], %s195
        %s197 = smul.u32 64, %s22
        %s198 = ssub.s32 69, %s197
        %p199 = scmp.lt.s32.totalorder %s198, 64
        %s200 = scalar_select %p199, %s198, 64
        %s201 = smul.u32 128, %s200
        %s202 = smul.u32 64, %s22
        %s203 = ssub.s32 69, %s202
        %p204 = scmp.lt.s32.totalorder %s203, 64
        %s205 = scalar_select %p204, %s203, 64
        %s206 = smul.u32 128, %s205
        %s207 = sld [smem:[#allocation2]]
        %s208 = sld [smem:[#allocation3]]
        %v209 = vld [vmem:[%s174] sm:$0xff]
        %v210 = vld [vmem:[%s174 + $0x8] sm:$0xff]
        %v211 = vld [vmem:[%s174 + $0x10] sm:$0xff]
        %v212 = vld [vmem:[%s174 + $0x18] sm:$0xff]
        %v213 = vld [vmem:[%s174 + $0x20] sm:$0xff]
        %v214 = vld [vmem:[%s174 + $0x28] sm:$0xff]
        %v215 = vld [vmem:[%s174 + $0x30] sm:$0xff]
        %v216 = vld [vmem:[%s174 + $0x38] sm:$0xff]
        %v217 = vld [vmem:[%s174 + $0x40] sm:$0xff]
        %v218 = vld [vmem:[%s174 + $0x48] sm:$0xff]
        %v219 = vld [vmem:[%s174 + $0x50] sm:$0xff]
        %v220 = vld [vmem:[%s174 + $0x58] sm:$0xff]
        %v221 = vld [vmem:[%s174 + $0x60] sm:$0xff]
        %v222 = vld [vmem:[%s174 + $0x68] sm:$0xff]
        %v223 = vld [vmem:[%s174 + $0x70] sm:$0xff]
        %v224 = vld [vmem:[%s174 + $0x78] sm:$0xff]
        %v225 = vld [vmem:[%s174 + $0x80] sm:$0xff]
        %v226 = vld [vmem:[%s174 + $0x88] sm:$0xff]
        %v227 = vld [vmem:[%s174 + $0x90] sm:$0xff]
        %v228 = vld [vmem:[%s174 + $0x98] sm:$0xff]
        %v229 = vld [vmem:[%s174 + $0xa0] sm:$0xff]
        %v230 = vld [vmem:[%s174 + $0xa8] sm:$0xff]
        %v231 = vld [vmem:[%s174 + $0xb0] sm:$0xff]
        %v232 = vld [vmem:[%s174 + $0xb8] sm:$0xff]
        %v233 = vld [vmem:[%s174 + $0xc0] sm:$0xff]
        %v234 = vld [vmem:[%s174 + $0xc8] sm:$0xff]
        %v235 = vld [vmem:[%s174 + $0xd0] sm:$0xff]
        %v236 = vld [vmem:[%s174 + $0xd8] sm:$0xff]
        %v237 = vld [vmem:[%s174 + $0xe0] sm:$0xff]
        %v238 = vld [vmem:[%s174 + $0xe8] sm:$0xff]
        %v239 = vld [vmem:[%s174 + $0xf0] sm:$0xff]
        %v240 = vld [vmem:[%s174 + $0xf8] sm:$0xff]
        %v241 = vld [vmem:[%s174 + $0x100] sm:$0xff]
        %v242 = vld [vmem:[%s174 + $0x108] sm:$0xff]
        %v243 = vld [vmem:[%s174 + $0x110] sm:$0xff]
        %v244 = vld [vmem:[%s174 + $0x118] sm:$0xff]
        %v245 = vld [vmem:[%s174 + $0x120] sm:$0xff]
        %v246 = vld [vmem:[%s174 + $0x128] sm:$0xff]
        %v247 = vld [vmem:[%s174 + $0x130] sm:$0xff]
        %v248 = vld [vmem:[%s174 + $0x138] sm:$0xff]
        %v249 = vld [vmem:[%s174 + $0x140] sm:$0xff]
        %v250 = vld [vmem:[%s174 + $0x148] sm:$0xff]
        %v251 = vld [vmem:[%s174 + $0x150] sm:$0xff]
        %v252 = vld [vmem:[%s174 + $0x158] sm:$0xff]
        %v253 = vld [vmem:[%s174 + $0x160] sm:$0xff]
        %v254 = vld [vmem:[%s174 + $0x168] sm:$0xff]
        %v255 = vld [vmem:[%s174 + $0x170] sm:$0xff]
        %v256 = vld [vmem:[%s174 + $0x178] sm:$0xff]
        %v257 = vld [vmem:[%s174 + $0x180] sm:$0xff]
        %v258 = vld [vmem:[%s174 + $0x188] sm:$0xff]
        %v259 = vld [vmem:[%s174 + $0x190] sm:$0xff]
        %v260 = vld [vmem:[%s174 + $0x198] sm:$0xff]
        %v261 = vld [vmem:[%s174 + $0x1a0] sm:$0xff]
        %v262 = vld [vmem:[%s174 + $0x1a8] sm:$0xff]
        %v263 = vld [vmem:[%s174 + $0x1b0] sm:$0xff]
        %v264 = vld [vmem:[%s174 + $0x1b8] sm:$0xff]
        %v265 = vld [vmem:[%s174 + $0x1c0] sm:$0xff]
        %v266 = vld [vmem:[%s174 + $0x1c8] sm:$0xff]
        %v267 = vld [vmem:[%s174 + $0x1d0] sm:$0xff]
        %v268 = vld [vmem:[%s174 + $0x1d8] sm:$0xff]
        %v269 = vld [vmem:[%s174 + $0x1e0] sm:$0xff]
        %v270 = vld [vmem:[%s174 + $0x1e8] sm:$0xff]
        %v271 = vld [vmem:[%s174 + $0x1f0] sm:$0xff]
        %v272 = vld [vmem:[%s174 + $0x1f8] sm:$0xff]
        %v273 = vstv %s207
        %v274 = vmul.f32 %v209, %v273
        %v275 = vmul.f32 %v210, %v273
        %v276 = vmul.f32 %v211, %v273
        %v277 = vmul.f32 %v212, %v273
        %v278 = vmul.f32 %v213, %v273
        %v279 = vmul.f32 %v214, %v273
        %v280 = vmul.f32 %v215, %v273
        %v281 = vmul.f32 %v216, %v273
        %v282 = vmul.f32 %v217, %v273
        %v283 = vmul.f32 %v218, %v273
        %v284 = vmul.f32 %v219, %v273
        %v285 = vmul.f32 %v220, %v273
        %v286 = vmul.f32 %v221, %v273
        %v287 = vmul.f32 %v222, %v273
        %v288 = vmul.f32 %v223, %v273
        %v289 = vmul.f32 %v224, %v273
        %v290 = vmul.f32 %v225, %v273
        %v291 = vmul.f32 %v226, %v273
        %v292 = vmul.f32 %v227, %v273
        %v293 = vmul.f32 %v228, %v273
        %v294 = vmul.f32 %v229, %v273
        %v295 = vmul.f32 %v230, %v273
        %v296 = vmul.f32 %v231, %v273
        %v297 = vmul.f32 %v232, %v273
        %v298 = vmul.f32 %v233, %v273
        %v299 = vmul.f32 %v234, %v273
        %v300 = vmul.f32 %v235, %v273
        %v301 = vmul.f32 %v236, %v273
        %v302 = vmul.f32 %v237, %v273
        %v303 = vmul.f32 %v238, %v273
        %v304 = vmul.f32 %v239, %v273
        %v305 = vmul.f32 %v240, %v273
        %v306 = vmul.f32 %v241, %v273
        %v307 = vmul.f32 %v242, %v273
        %v308 = vmul.f32 %v243, %v273
        %v309 = vmul.f32 %v244, %v273
        %v310 = vmul.f32 %v245, %v273
        %v311 = vmul.f32 %v246, %v273
        %v312 = vmul.f32 %v247, %v273
        %v313 = vmul.f32 %v248, %v273
        %v314 = vmul.f32 %v249, %v273
        %v315 = vmul.f32 %v250, %v273
        %v316 = vmul.f32 %v251, %v273
        %v317 = vmul.f32 %v252, %v273
        %v318 = vmul.f32 %v253, %v273
        %v319 = vmul.f32 %v254, %v273
        %v320 = vmul.f32 %v255, %v273
        %v321 = vmul.f32 %v256, %v273
        %v322 = vmul.f32 %v257, %v273
        %v323 = vmul.f32 %v258, %v273
        %v324 = vmul.f32 %v259, %v273
        %v325 = vmul.f32 %v260, %v273
        %v326 = vmul.f32 %v261, %v273
        %v327 = vmul.f32 %v262, %v273
        %v328 = vmul.f32 %v263, %v273
        %v329 = vmul.f32 %v264, %v273
        %v330 = vmul.f32 %v265, %v273
        %v331 = vmul.f32 %v266, %v273
        %v332 = vmul.f32 %v267, %v273
        %v333 = vmul.f32 %v268, %v273
        %v334 = vmul.f32 %v269, %v273
        %v335 = vmul.f32 %v270, %v273
        %v336 = vmul.f32 %v271, %v273
        %v337 = vmul.f32 %v272, %v273
        %v338 = vstv %s208
        %v339 = vadd.f32 %v274, %v338
        %v340 = vadd.f32 %v275, %v338
        %v341 = vadd.f32 %v276, %v338
        %v342 = vadd.f32 %v277, %v338
        %v343 = vadd.f32 %v278, %v338
        %v344 = vadd.f32 %v279, %v338
        %v345 = vadd.f32 %v280, %v338
        %v346 = vadd.f32 %v281, %v338
        %v347 = vadd.f32 %v282, %v338
        %v348 = vadd.f32 %v283, %v338
        %v349 = vadd.f32 %v284, %v338
        %v350 = vadd.f32 %v285, %v338
        %v351 = vadd.f32 %v286, %v338
        %v352 = vadd.f32 %v287, %v338
        %v353 = vadd.f32 %v288, %v338
        %v354 = vadd.f32 %v289, %v338
        %v355 = vadd.f32 %v290, %v338
        %v356 = vadd.f32 %v291, %v338
        %v357 = vadd.f32 %v292, %v338
        %v358 = vadd.f32 %v293, %v338
        %v359 = vadd.f32 %v294, %v338
        %v360 = vadd.f32 %v295, %v338
        %v361 = vadd.f32 %v296, %v338
        %v362 = vadd.f32 %v297, %v338
        %v363 = vadd.f32 %v298, %v338
        %v364 = vadd.f32 %v299, %v338
        %v365 = vadd.f32 %v300, %v338
        %v366 = vadd.f32 %v301, %v338
        %v367 = vadd.f32 %v302, %v338
        %v368 = vadd.f32 %v303, %v338
        %v369 = vadd.f32 %v304, %v338
        %v370 = vadd.f32 %v305, %v338
        %v371 = vadd.f32 %v306, %v338
        %v372 = vadd.f32 %v307, %v338
        %v373 = vadd.f32 %v308, %v338
        %v374 = vadd.f32 %v309, %v338
        %v375 = vadd.f32 %v310, %v338
        %v376 = vadd.f32 %v311, %v338
        %v377 = vadd.f32 %v312, %v338
        %v378 = vadd.f32 %v313, %v338
        %v379 = vadd.f32 %v314, %v338
        %v380 = vadd.f32 %v315, %v338
        %v381 = vadd.f32 %v316, %v338
        %v382 = vadd.f32 %v317, %v338
        %v383 = vadd.f32 %v318, %v338
        %v384 = vadd.f32 %v319, %v338
        %v385 = vadd.f32 %v320, %v338
        %v386 = vadd.f32 %v321, %v338
        %v387 = vadd.f32 %v322, %v338
        %v388 = vadd.f32 %v323, %v338
        %v389 = vadd.f32 %v324, %v338
        %v390 = vadd.f32 %v325, %v338
        %v391 = vadd.f32 %v326, %v338
        %v392 = vadd.f32 %v327, %v338
        %v393 = vadd.f32 %v328, %v338
        %v394 = vadd.f32 %v329, %v338
        %v395 = vadd.f32 %v330, %v338
        %v396 = vadd.f32 %v331, %v338
        %v397 = vadd.f32 %v332, %v338
        %v398 = vadd.f32 %v333, %v338
        %v399 = vadd.f32 %v334, %v338
        %v400 = vadd.f32 %v335, %v338
        %v401 = vadd.f32 %v336, %v338
        %v402 = vadd.f32 %v337, %v338
        %403 = vst [vmem:[%s196] sm:$0xff] %v339
        %404 = vst [vmem:[%s196 + $0x8] sm:$0xff] %v340
        %405 = vst [vmem:[%s196 + $0x10] sm:$0xff] %v341
        %406 = vst [vmem:[%s196 + $0x18] sm:$0xff] %v342
        %407 = vst [vmem:[%s196 + $0x20] sm:$0xff] %v343
        %408 = vst [vmem:[%s196 + $0x28] sm:$0xff] %v344
        %409 = vst [vmem:[%s196 + $0x30] sm:$0xff] %v345
        %410 = vst [vmem:[%s196 + $0x38] sm:$0xff] %v346
        %411 = vst [vmem:[%s196 + $0x40] sm:$0xff] %v347
        %412 = vst [vmem:[%s196 + $0x48] sm:$0xff] %v348
        %413 = vst [vmem:[%s196 + $0x50] sm:$0xff] %v349
        %414 = vst [vmem:[%s196 + $0x58] sm:$0xff] %v350
        %415 = vst [vmem:[%s196 + $0x60] sm:$0xff] %v351
        %416 = vst [vmem:[%s196 + $0x68] sm:$0xff] %v352
        %417 = vst [vmem:[%s196 + $0x70] sm:$0xff] %v353
        %418 = vst [vmem:[%s196 + $0x78] sm:$0xff] %v354
        %419 = vst [vmem:[%s196 + $0x80] sm:$0xff] %v355
        %420 = vst [vmem:[%s196 + $0x88] sm:$0xff] %v356
        %421 = vst [vmem:[%s196 + $0x90] sm:$0xff] %v357
        %422 = vst [vmem:[%s196 + $0x98] sm:$0xff] %v358
        %423 = vst [vmem:[%s196 + $0xa0] sm:$0xff] %v359
        %424 = vst [vmem:[%s196 + $0xa8] sm:$0xff] %v360
        %425 = vst [vmem:[%s196 + $0xb0] sm:$0xff] %v361
        %426 = vst [vmem:[%s196 + $0xb8] sm:$0xff] %v362
        %427 = vst [vmem:[%s196 + $0xc0] sm:$0xff] %v363
        %428 = vst [vmem:[%s196 + $0xc8] sm:$0xff] %v364
        %429 = vst [vmem:[%s196 + $0xd0] sm:$0xff] %v365
        %430 = vst [vmem:[%s196 + $0xd8] sm:$0xff] %v366
        %431 = vst [vmem:[%s196 + $0xe0] sm:$0xff] %v367
        %432 = vst [vmem:[%s196 + $0xe8] sm:$0xff] %v368
        %433 = vst [vmem:[%s196 + $0xf0] sm:$0xff] %v369
        %434 = vst [vmem:[%s196 + $0xf8] sm:$0xff] %v370
        %435 = vst [vmem:[%s196 + $0x100] sm:$0xff] %v371
        %436 = vst [vmem:[%s196 + $0x108] sm:$0xff] %v372
        %437 = vst [vmem:[%s196 + $0x110] sm:$0xff] %v373
        %438 = vst [vmem:[%s196 + $0x118] sm:$0xff] %v374
        %439 = vst [vmem:[%s196 + $0x120] sm:$0xff] %v375
        %440 = vst [vmem:[%s196 + $0x128] sm:$0xff] %v376
        %441 = vst [vmem:[%s196 + $0x130] sm:$0xff] %v377
        %442 = vst [vmem:[%s196 + $0x138] sm:$0xff] %v378
        %443 = vst [vmem:[%s196 + $0x140] sm:$0xff] %v379
        %444 = vst [vmem:[%s196 + $0x148] sm:$0xff] %v380
        %445 = vst [vmem:[%s196 + $0x150] sm:$0xff] %v381
        %446 = vst [vmem:[%s196 + $0x158] sm:$0xff] %v382
        %447 = vst [vmem:[%s196 + $0x160] sm:$0xff] %v383
        %448 = vst [vmem:[%s196 + $0x168] sm:$0xff] %v384
        %449 = vst [vmem:[%s196 + $0x170] sm:$0xff] %v385
        %450 = vst [vmem:[%s196 + $0x178] sm:$0xff] %v386
        %451 = vst [vmem:[%s196 + $0x180] sm:$0xff] %v387
        %452 = vst [vmem:[%s196 + $0x188] sm:$0xff] %v388
        %453 = vst [vmem:[%s196 + $0x190] sm:$0xff] %v389
        %454 = vst [vmem:[%s196 + $0x198] sm:$0xff] %v390
        %455 = vst [vmem:[%s196 + $0x1a0] sm:$0xff] %v391
        %456 = vst [vmem:[%s196 + $0x1a8] sm:$0xff] %v392
        %457 = vst [vmem:[%s196 + $0x1b0] sm:$0xff] %v393
        %458 = vst [vmem:[%s196 + $0x1b8] sm:$0xff] %v394
        %459 = vst [vmem:[%s196 + $0x1c0] sm:$0xff] %v395
        %460 = vst [vmem:[%s196 + $0x1c8] sm:$0xff] %v396
        %461 = vst [vmem:[%s196 + $0x1d0] sm:$0xff] %v397
        %462 = vst [vmem:[%s196 + $0x1d8] sm:$0xff] %v398
        %463 = vst [vmem:[%s196 + $0x1e0] sm:$0xff] %v399
        %464 = vst [vmem:[%s196 + $0x1e8] sm:$0xff] %v400
        %465 = vst [vmem:[%s196 + $0x1f0] sm:$0xff] %v401
        %466 = vst [vmem:[%s196 + $0x1f8] sm:$0xff] %v402
        %s467 = sand.u32 %s98, 1
        %s468 = scalar_lea.sflag [#allocation6], %s467
        %s469 = sand.u32 %s98, 1
        %s470 = smul.addr %s469, 512
        %s471 = scalar_lea.vmem [#allocation7], %s470
        // Predicated region
        $region37: #{tpu_custom_call.1} parent=31 // pred_check
          %p472 = pneg %p108
        $region38: #{tpu_custom_call.1} parent=31 // pred_check_branch
          %474 = sbr.rel (%p472) target = $region40
        $region39: #{tpu_custom_call.1} parent=31 // pred_region
          %s475 = smul.u32 64, %s22
          %s476 = ssub.s32 69, %s475
          %p477 = scmp.lt.s32.totalorder %s476, 64
          %s478 = scalar_select %p477, %s476, 64
          %s479 = smul.u32 128, %s478
          %s481 = ssub.s32 8192, %s479
          %482 = vsyncadd %s468, %s481
          %p483 = scmp.ne.s32.totalorder 0, %s479
          %s484 = smul.addr %s475, 128
          %s485 = scalar_lea.hbm %s3, %s484
          %s486 = smul.u32 8, %s478
          %s487 = sshll.u32 %s471, 4
          %s488 = int_to_ptr.vmem [resolvable:$true] %s487
          %s489 = sshll.u32 %s486, 4
          %493 = dma.vmem_to_hbm [thread:$0]  (%p483), %s488, %s489, %s485, %s468, 128, 128, 8
        $region40: #{tpu_custom_call.1} parent=31 // pred_fallthru
          _
      $region32: #{tpu_custom_call.1} parent=5 // pred_fallthru
        _
      %p494 = scmp.le.s32.totalorder 2, %s17
      // Predicated region
      $region41: #{tpu_custom_call.1} parent=5 // pred_check
        %p495 = pneg %p494
      $region42: #{tpu_custom_call.1} parent=5 // pred_check_branch
        %497 = sbr.rel (%p495) target = $region44
      $region43: #{tpu_custom_call.1} parent=5 // pred_region
        %s498 = ssub.s32 %s17, 2
        // Predicated region
        $region45: #{tpu_custom_call.1} parent=43 // pred_check
          %p499 = pneg %p114
        $region46: #{tpu_custom_call.1} parent=43 // pred_check_branch
          %501 = sbr.rel (%p499) target = $region48
        $region47: #{tpu_custom_call.1} parent=43 // pred_region
          %s502 = sand.u32 %s99, 1
          %s503 = scalar_lea.sflag [#allocation6], %s502
          %s504 = sand.u32 %s99, 1
          %s505 = smul.addr %s504, 512
          %s506 = scalar_lea.vmem [#allocation7], %s505
          %507 = dma.done %s503, 8192
        $region48: #{tpu_custom_call.1} parent=43 // pred_fallthru
          _
      $region44: #{tpu_custom_call.1} parent=5 // pred_fallthru
        _
    $region6: #{tpu_custom_call.1} parent=1 // loop_footer
      %s21 = sadd.s32 1, %s17
    $region7: #{tpu_custom_call.1} parent=1 // loop_footer_branch
      %16 = sbr.rel target = $region3
    $region8: #{tpu_custom_call.1} parent=1 // loop_exit
      _
    %508 = vsyncpa [#allocation5], 1
    %s509 = scalar_lea.sflag [#allocation5], 1
    %510 = vsyncpa %s509, 1
    %511 = vsyncpa [#allocation6], 1
    %s512 = scalar_lea.sflag [#allocation6], 1
    %513 = vsyncpa %s512, 1

</llo_original>
